<compile_context>
chip_gen: v5e
topology: v5e:2x2
jax: 0.10.0
libtpu: 0.0.40
codegen_flags: <defaults>
</compile_context>

<pallas_src>
import jax
import jax.numpy as jnp
from jax.experimental import pallas as pl
from jax.experimental.pallas import tpu as pltpu


OUT_PAD = 128  # lane-dense padded width holding [mu(3) | logstd(3) | zeros]


# ----------------------------------------------------------------------------
# Kernels
# ----------------------------------------------------------------------------
def feature_encoder_kernel(x_ref, w1_ref, b1_ref, w2_ref, b2_ref, fe_ref):
    # fe = relu( relu(x @ W1 + b1) @ W2 + b2 )
    h0 = jnp.dot(x_ref[...], w1_ref[...], preferred_element_type=jnp.float32)
    h0 = jnp.maximum(h0 + b1_ref[...], 0.0)
    fe = jnp.dot(h0, w2_ref[...], preferred_element_type=jnp.float32)
    fe = jnp.maximum(fe + b2_ref[...], 0.0)
    fe_ref[...] = fe.astype(fe_ref.dtype)


def gcn_hidden_kernel(ahat_ref, fe_ref, wg1_ref, wg23_ref, h1w_ref):
    # gc1 (re-associated): hidden1 = tanh( (A_hat @ fe) @ Wg1 )
    afe = jnp.dot(ahat_ref[...], fe_ref[...], preferred_element_type=jnp.float32)
    h1 = jnp.tanh(
        jnp.dot(afe.astype(wg1_ref.dtype), wg1_ref[...],
                preferred_element_type=jnp.float32)
    )
    # fused gc2/gc3 input projection: hidden1 @ [Wg2 | Wg3 | 0...]
    h1w = jnp.dot(h1.astype(wg23_ref.dtype), wg23_ref[...],
                  preferred_element_type=jnp.float32)
    h1w_ref[...] = h1w.astype(h1w_ref.dtype)


def gcn_out_kernel(ahat_ref, h1w_ref, out_ref):
    # single fused A_hat pass -> [mu | logstd | pad], lane-dense store
    out = jnp.dot(ahat_ref[...], h1w_ref[...], preferred_element_type=jnp.float32)
    out_ref[...] = out.astype(out_ref.dtype)


# ----------------------------------------------------------------------------
# Wrapper
# ----------------------------------------------------------------------------
def _row_tile(n, max_tile=512):
    # f32/bf16 sublane-friendly row tile; full array if small.
    return min(max_tile, ((n + 7) // 8) * 8)


def vgae_encoder_pallas(x, edge_index, coords, params, *, max_row_tile=512):
    """Forward pass of VGAEencoder. Returns (mu, logstd, po_emb)."""
    N, f_in = x.shape
    zdim = params["w2"].shape[1]

    # --- GCN normalized adjacency (glue; symmetric edge_index assumed) ------
    # TODO(synk): dense O(N^2) A_hat; for large sparse graphs a scalar-prefetch
    # gather formulation over neighbor lists would replace this.
    src, dst = edge_index[0], edge_index[1]
    A = jnp.zeros((N, N), jnp.float32).at[dst, src].set(1.0)
    A = A + jnp.eye(N, dtype=jnp.float32)            # self loops
    deg = jnp.sum(A, axis=1)
    dinv = jax.lax.rsqrt(deg)
    # bf16 HBM copy of the only O(N^2) operand; MXU accumulates in f32.
    a_hat = (A * dinv[:, None] * dinv[None, :]).astype(jnp.bfloat16)

    tm = _row_tile(N, max_row_tile)
    grid = (pl.cdiv(N, tm),)
    cparams = pltpu.CompilerParams(
        dimension_semantics=("parallel",),
        vmem_limit_bytes=48 * 1024 * 1024,   # sized for v7x's 64 MiB physical VMEM
    )

    # --- stage 1: feature encoder (row-tiled; weights VMEM-resident) --------
    fe_emb = pl.pallas_call(
        feature_encoder_kernel,
        out_shape=jax.ShapeDtypeStruct((N, zdim), jnp.float32),
        grid=grid,
        in_specs=[
            pl.BlockSpec((tm, f_in), lambda i: (i, 0)),
            pl.BlockSpec((f_in, 512), lambda i: (0, 0)),
            pl.BlockSpec((1, 512), lambda i: (0, 0)),
            pl.BlockSpec((512, zdim), lambda i: (0, 0)),
            pl.BlockSpec((1, zdim), lambda i: (0, 0)),
        ],
        out_specs=pl.BlockSpec((tm, zdim), lambda i: (i, 0)),
        compiler_params=cparams,
        cost_estimate=pl.CostEstimate(
            flops=2 * N * (f_in * 512 + 512 * zdim),
            transcendentals=0,
            bytes_accessed=4 * (N * f_in + f_in * 512 + 512 * zdim + N * zdim),
        ),
    )(x, params["w1"], params["b1"], params["w2"], params["b2"])

    # bf16 MXU operands for the GCN stages.
    fe_bf16 = fe_emb.astype(jnp.bfloat16)
    wg1_bf16 = params["wg1"].astype(jnp.bfloat16)
    wg23 = jnp.zeros((32, OUT_PAD), jnp.bfloat16)
    wg23 = wg23.at[:, 0:3].set(params["wg2"].astype(jnp.bfloat16))
    wg23 = wg23.at[:, 3:6].set(params["wg3"].astype(jnp.bfloat16))

    # --- stage 2: hidden1 = tanh((A_hat @ fe) @ Wg1); project by [Wg2|Wg3] ---
    h1w = pl.pallas_call(
        gcn_hidden_kernel,
        out_shape=jax.ShapeDtypeStruct((N, OUT_PAD), jnp.bfloat16),
        grid=grid,
        in_specs=[
            pl.BlockSpec((tm, N), lambda i: (i, 0)),     # A_hat row slab (pipelined)
            pl.BlockSpec((N, zdim), lambda i: (0, 0)),   # fe fully resident
            pl.BlockSpec((zdim, 32), lambda i: (0, 0)),
            pl.BlockSpec((32, OUT_PAD), lambda i: (0, 0)),
        ],
        out_specs=pl.BlockSpec((tm, OUT_PAD), lambda i: (i, 0)),
        compiler_params=cparams,
        cost_estimate=pl.CostEstimate(
            flops=2 * N * N * zdim + 2 * N * zdim * 32 + 2 * N * 32 * OUT_PAD,
            transcendentals=N * 32,
            bytes_accessed=2 * N * N + 2 * N * zdim + 2 * N * OUT_PAD,
        ),
    )(a_hat, fe_bf16, wg1_bf16, wg23)

    # --- stage 3: [mu | logstd] = A_hat @ h1w (one fused A_hat pass) --------
    out = pl.pallas_call(
        gcn_out_kernel,
        out_shape=jax.ShapeDtypeStruct((N, OUT_PAD), jnp.float32),
        grid=grid,
        in_specs=[
            pl.BlockSpec((tm, N), lambda i: (i, 0)),
            pl.BlockSpec((N, OUT_PAD), lambda i: (0, 0)),
        ],
        out_specs=pl.BlockSpec((tm, OUT_PAD), lambda i: (i, 0)),
        compiler_params=cparams,
        cost_estimate=pl.CostEstimate(
            flops=2 * N * N * OUT_PAD,
            transcendentals=0,
            bytes_accessed=2 * N * N + 2 * N * OUT_PAD + 4 * N * OUT_PAD,
        ),
    )(a_hat, h1w)

    mu = out[:, 0:3]
    logstd = out[:, 3:6]

    # --- positional-encoding branch (glue) ----------------------------------
    z = fe_emb.reshape((N,) + (1,) * (coords.ndim - 2) + (zdim,))
    z = jnp.broadcast_to(z, coords.shape[:-1] + (zdim,))
    po_emb = jnp.concatenate([coords, z], axis=-1)
    # TODO(synk): FTPositionalDecoder is an external, undefined module (rebuilt
    # with random weights each forward in the reference); po_emb is returned as
    # the concatenated (coords, fe_emb) input to it.

    return mu, logstd, po_emb


# ----------------------------------------------------------------------------
# Deterministic parameter init (shapes from VGAEencoder.__init__)
# ----------------------------------------------------------------------------
def init_params(key, input_feat_dim, zdim):
    ks = jax.random.split(key, 7)

    def lin_w(k, fan_in, fan_out):
        bound = 1.0 / jnp.sqrt(fan_in)
        return jax.random.uniform(k, (fan_in, fan_out), jnp.float32, -bound, bound)

    def lin_b(k, fan_in, fan_out):
        bound = 1.0 / jnp.sqrt(fan_in)
        return jax.random.uniform(k, (1, fan_out), jnp.float32, -bound, bound)

    def glorot(k, fan_in, fan_out):
        bound = jnp.sqrt(6.0 / (fan_in + fan_out))
        return jax.random.uniform(k, (fan_in, fan_out), jnp.float32, -bound, bound)

    return {
        "w1": lin_w(ks[0], input_feat_dim, 512),   # fen1
        "b1": lin_b(ks[1], input_feat_dim, 512),
        "w2": lin_w(ks[2], 512, zdim),             # fen2
        "b2": lin_b(ks[3], 512, zdim),
        "wg1": glorot(ks[4], zdim, 32),            # gc1 (bias=False)
        "wg2": glorot(ks[5], 32, 3),               # gc2 (bias=False)
        "wg3": glorot(ks[6], 32, 3),               # gc3 (bias=False)
    }


if __name__ == "__main__":
    key = jax.random.PRNGKey(0)
    k_x, k_c, k_p = jax.random.split(key, 3)

    N = 16                 # nodes
    input_feat_dim = 32
    zdim = 16
    # pe_alpha / enc_type only feed FTPositionalDecoder (external); unused here.

    x = jax.random.normal(k_x, (N, input_feat_dim), jnp.float32)
    coords = jax.random.normal(k_c, (N, 3), jnp.float32)

    # symmetric ring graph edge_index, shape (2, 2N)
    idx = jnp.arange(N, dtype=jnp.int32)
    nxt = (idx + 1) % N
    edge_index = jnp.stack(
        [jnp.concatenate([idx, nxt]), jnp.concatenate([nxt, idx])], axis=0
    )

    params = init_params(k_p, input_feat_dim, zdim)

    mu, logstd, po_emb = vgae_encoder_pallas(x, edge_index, coords, params)
    jax.block_until_ready((mu, logstd, po_emb))

    assert mu.shape == (N, 3)
    assert logstd.shape == (N, 3)
    assert po_emb.shape == (N, 3 + zdim)
    assert bool(jnp.all(jnp.isfinite(mu))) and bool(jnp.all(jnp.isfinite(logstd)))
    print("KERNEL_OK")
</pallas_src>

<mosaic_0001>
module attributes {stable_mosaic.version = 11 : i64} {
  func.func @feature_encoder_kernel(%arg0: i32, %arg1: memref<16x32xf32, #tpu.memory_space<vmem>>, %arg2: memref<32x512xf32, #tpu.memory_space<vmem>>, %arg3: memref<1x512xf32, #tpu.memory_space<vmem>>, %arg4: memref<512x16xf32, #tpu.memory_space<vmem>>, %arg5: memref<1x16xf32, #tpu.memory_space<vmem>>, %arg6: memref<16x16xf32, #tpu.memory_space<vmem>>) attributes {dimension_semantics = [#tpu.dimension_semantics<parallel>], iteration_bounds = array<i64: 1>, scalar_prefetch = 0 : i64, scratch_operands = 0 : i64, tpu.core_type = #tpu.core_type<tc>, window_params = [{transform_indices = @transform_0, window_bounds = array<i64: 16, 32>}, {pipeline_mode = #tpu.pipeline_mode<synchronous>, transform_indices = @transform_1, window_bounds = array<i64: 32, 512>}, {pipeline_mode = #tpu.pipeline_mode<synchronous>, transform_indices = @transform_2, window_bounds = array<i64: 1, 512>}, {pipeline_mode = #tpu.pipeline_mode<synchronous>, transform_indices = @transform_3, window_bounds = array<i64: 512, 16>}, {pipeline_mode = #tpu.pipeline_mode<synchronous>, transform_indices = @transform_4, window_bounds = array<i64: 1, 16>}, {transform_indices = @transform_5, window_bounds = array<i64: 16, 16>}]} {
    %c0 = arith.constant 0 : index
    %c0_0 = arith.constant 0 : index
    %0 = vector.load %arg1[%c0, %c0_0] : memref<16x32xf32, #tpu.memory_space<vmem>>, vector<16x32xf32>
    %c0_1 = arith.constant 0 : index
    %c0_2 = arith.constant 0 : index
    %1 = vector.load %arg2[%c0_1, %c0_2] : memref<32x512xf32, #tpu.memory_space<vmem>>, vector<32x512xf32>
    %cst = arith.constant dense<0.000000e+00> : vector<16x512xf32>
    %2 = tpu.matmul %0, %1, %cst {dimension_numbers = #tpu.dot_dimension_numbers<[1], [0], [0], [1], [0, 0, 1, 1], [], []>} : vector<16x32xf32>, vector<32x512xf32>, vector<16x512xf32> -> vector<16x512xf32>
    %c0_3 = arith.constant 0 : index
    %c0_4 = arith.constant 0 : index
    %3 = vector.load %arg3[%c0_3, %c0_4] : memref<1x512xf32, #tpu.memory_space<vmem>>, vector<1x512xf32>
    %4 = vector.broadcast %3 : vector<1x512xf32> to vector<16x512xf32>
    %5 = arith.addf %2, %4 : vector<16x512xf32>
    %cst_5 = arith.constant 0.000000e+00 : f32
    %6 = vector.broadcast %cst_5 : f32 to vector<16x512xf32>
    %7 = arith.maximumf %5, %6 : vector<16x512xf32>
    %c0_6 = arith.constant 0 : index
    %c0_7 = arith.constant 0 : index
    %8 = vector.load %arg4[%c0_6, %c0_7] : memref<512x16xf32, #tpu.memory_space<vmem>>, vector<512x16xf32>
    %cst_8 = arith.constant dense<0.000000e+00> : vector<16x16xf32>
    %9 = tpu.matmul %7, %8, %cst_8 {dimension_numbers = #tpu.dot_dimension_numbers<[1], [0], [0], [1], [0, 0, 1, 1], [], []>} : vector<16x512xf32>, vector<512x16xf32>, vector<16x16xf32> -> vector<16x16xf32>
    %c0_9 = arith.constant 0 : index
    %c0_10 = arith.constant 0 : index
    %10 = vector.load %arg5[%c0_9, %c0_10] : memref<1x16xf32, #tpu.memory_space<vmem>>, vector<1x16xf32>
    %11 = vector.broadcast %10 : vector<1x16xf32> to vector<16x16xf32>
    %12 = arith.addf %9, %11 : vector<16x16xf32>
    %cst_11 = arith.constant 0.000000e+00 : f32
    %13 = vector.broadcast %cst_11 : f32 to vector<16x16xf32>
    %14 = arith.maximumf %12, %13 : vector<16x16xf32>
    %c0_12 = arith.constant 0 : index
    %c0_13 = arith.constant 0 : index
    %15 = vector.load %arg6[%c0_12, %c0_13] : memref<16x16xf32, #tpu.memory_space<vmem>>, vector<16x16xf32>
    tpu.vector_store %arg6[%c0_12, %c0_13], %14 {strides = array<i32>} : memref<16x16xf32, #tpu.memory_space<vmem>>, vector<16x16xf32>,
    return
  }
  func.func @transform_0(%arg0: i32) -> (i32, i32) {
    %c0_i32 = arith.constant 0 : i32
    %c0_i32_0 = arith.constant 0 : i32
    return %arg0, %c0_i32 : i32, i32
  }
  func.func @transform_1(%arg0: i32) -> (i32, i32) {
    %c0_i32 = arith.constant 0 : i32
    %c0_i32_0 = arith.constant 0 : i32
    %c0_i32_1 = arith.constant 0 : i32
    return %c0_i32, %c0_i32_0 : i32, i32
  }
  func.func @transform_2(%arg0: i32) -> (i32, i32) {
    %c0_i32 = arith.constant 0 : i32
    %c0_i32_0 = arith.constant 0 : i32
    %c0_i32_1 = arith.constant 0 : i32
    return %c0_i32, %c0_i32_0 : i32, i32
  }
  func.func @transform_3(%arg0: i32) -> (i32, i32) {
    %c0_i32 = arith.constant 0 : i32
    %c0_i32_0 = arith.constant 0 : i32
    %c0_i32_1 = arith.constant 0 : i32
    return %c0_i32, %c0_i32_0 : i32, i32
  }
  func.func @transform_4(%arg0: i32) -> (i32, i32) {
    %c0_i32 = arith.constant 0 : i32
    %c0_i32_0 = arith.constant 0 : i32
    %c0_i32_1 = arith.constant 0 : i32
    return %c0_i32, %c0_i32_0 : i32, i32
  }
  func.func @transform_5(%arg0: i32) -> (i32, i32) {
    %c0_i32 = arith.constant 0 : i32
    %c0_i32_0 = arith.constant 0 : i32
    return %arg0, %c0_i32 : i32, i32
  }
}

</mosaic_0001>

<llo_original>
// kernel: tpu_custom_call.1
$region0: #{tpu_custom_call.1}
  #allocation0 [shape = 'u32[]', space=smem, size = 0x4, offset = 0x4, fixed_abs, tag = 'smem constant byte address 0x4 - core index']
  #allocation1 [shape = 'u32[72,128]{1,0:T(1,128)}', space=vmem, size = 0x9000, scoped, tag = 'internal scratch']
  %s0 = inlined_call_operand.vmem [shape: f32[16,32], index: 0, kind: input, shape index: {}]
  %s1 = inlined_call_operand.vmem [shape: f32[32,512], index: 1, kind: input, shape index: {}]
  %s2 = inlined_call_operand.vmem [shape: f32[1,512], index: 2, kind: input, shape index: {}]
  %s3 = inlined_call_operand.vmem [shape: f32[512,16], index: 3, kind: input, shape index: {}]
  %s4 = inlined_call_operand.vmem [shape: f32[1,16], index: 4, kind: input, shape index: {}]
  %s5 = inlined_call_operand.hbm [shape: f32[16,16], index: 5, kind: output, shape index: {}]
  %s6 = sld [smem:[#allocation0]]
  $region30: #{tpu_custom_call.1} parent=0
    _
  %s8 = ssub.s32 1, %s6
  %s9 = scalar_select 0, %s8, %s6
  $region1: #{tpu_custom_call.1} parent=0
    #allocation2 [shape = 'u8[8192]{0}', space=vmem, size = 0x2000, scoped, tag = 'output window, operand 0, single buffered']
    #allocation3 [shape = 's32[1]{0}', space=sflag, size = 0x4, scoped, tag = 'scoped memory for tpu_custom_call.1']
    %10 = vsyncpa [#allocation3], 0
    // Predicated region
    $region2: #{tpu_custom_call.1} parent=1 // pred_check
      _
    $region3: #{tpu_custom_call.1} parent=1 // pred_check_branch
      %12 = sbr.rel (0) target = $region5
    $region4: #{tpu_custom_call.1} parent=1 // pred_region
      _
    $region5: #{tpu_custom_call.1} parent=1 // pred_fallthru
      _
    // Predicated region
    $region6: #{tpu_custom_call.1} parent=1 // pred_check
      _
    $region7: #{tpu_custom_call.1} parent=1 // pred_check_branch
      %14 = sbr.rel (0) target = $region9
    $region8: #{tpu_custom_call.1} parent=1 // pred_region
      _
    $region9: #{tpu_custom_call.1} parent=1 // pred_fallthru
      _
    // Predicated region
    $region10: #{tpu_custom_call.1} parent=1 // pred_check
      _
    $region11: #{tpu_custom_call.1} parent=1 // pred_check_branch
      %16 = sbr.rel (0) target = $region13
    $region12: #{tpu_custom_call.1} parent=1 // pred_region
      _
    $region13: #{tpu_custom_call.1} parent=1 // pred_fallthru
      _
    // Predicated region
    $region14: #{tpu_custom_call.1} parent=1 // pred_check
      _
    $region15: #{tpu_custom_call.1} parent=1 // pred_check_branch
      %18 = sbr.rel (0) target = $region17
    $region16: #{tpu_custom_call.1} parent=1 // pred_region
      _
    $region17: #{tpu_custom_call.1} parent=1 // pred_fallthru
      _
    // Predicated region
    $region18: #{tpu_custom_call.1} parent=1 // pred_check
      _
    $region19: #{tpu_custom_call.1} parent=1 // pred_check_branch
      %20 = sbr.rel (0) target = $region21
    $region20: #{tpu_custom_call.1} parent=1 // pred_region
      _
    $region21: #{tpu_custom_call.1} parent=1 // pred_fallthru
      _
    %v21 = vld [vmem:[%s0] sm:$0xff]
    %v22 = vld [vmem:[%s0 + $0x8] sm:$0xff]
    %v23 = vld [vmem:[%s1] sm:$0xff]
    %v24 = vld [vmem:[%s1 + $0x8] sm:$0xff]
    %v25 = vld [vmem:[%s1 + $0x10] sm:$0xff]
    %v26 = vld [vmem:[%s1 + $0x18] sm:$0xff]
    %v27 = vld [vmem:[%s1 + $0x20] sm:$0xff]
    %v28 = vld [vmem:[%s1 + $0x28] sm:$0xff]
    %v29 = vld [vmem:[%s1 + $0x30] sm:$0xff]
    %v30 = vld [vmem:[%s1 + $0x38] sm:$0xff]
    %v31 = vld [vmem:[%s1 + $0x40] sm:$0xff]
    %v32 = vld [vmem:[%s1 + $0x48] sm:$0xff]
    %v33 = vld [vmem:[%s1 + $0x50] sm:$0xff]
    %v34 = vld [vmem:[%s1 + $0x58] sm:$0xff]
    %v35 = vld [vmem:[%s1 + $0x60] sm:$0xff]
    %v36 = vld [vmem:[%s1 + $0x68] sm:$0xff]
    %v37 = vld [vmem:[%s1 + $0x70] sm:$0xff]
    %v38 = vld [vmem:[%s1 + $0x78] sm:$0xff]
    %v39 = vld [vmem:[%s2] sm:$0xf]
    %v41 = vperm.slane %v39, 0
    %v42 = vperm.slane %v39, 1
    %v43 = vperm.slane %v39, 2
    %v44 = vperm.slane %v39, 3
    %vm49 = vcmask 261120
    %v51 = vsel %vm49, %v21, 0
    %v54 = vsel %vm49, %v22, 0
    %56 = vmatpush.msra.mxu0 0.0
    %57 = vmatpush.msra.mxu0 0.0
    %58 = vmatpush.msra.mxu0 0.0
    %59 = vmatpush.msra.mxu0 0.0
    %60 = vmatpush.msra.mxu0 0.0
    %61 = vmatpush.msra.mxu0 0.0
    %62 = vmatpush.msra.mxu0 0.0
    %63 = vmatpush.msra.mxu0 0.0
    %64 = vmatpush.msra.mxu0 0.0
    %65 = vmatpush.msra.mxu0 0.0
    %66 = vmatpush.msra.mxu0 0.0
    %67 = vmatpush.msra.mxu0 0.0
    %68 = vmatpush.msra.mxu0 %v35
    %69 = vmatpush.msra.mxu0 %v31
    %70 = vmatpush.msra.mxu0 %v27
    %71 = vmatpush.msra.mxu0 %v23
    %72 = vmatmul.f32.gmra.mxu0 %v51
    %v73 = vpop.f32.mrf.mxu0
    %v74 = vadd.f32 %v41, %v73
    %75 = vmatmul.f32.gmra.mxu0 %v54
    %v76 = vpop.f32.mrf.mxu0
    %v77 = vadd.f32 %v41, %v76
    %78 = vdwg.mxu0
    %79 = vmatpush.msra.mxu0 0.0
    %80 = vmatpush.msra.mxu0 0.0
    %81 = vmatpush.msra.mxu0 0.0
    %82 = vmatpush.msra.mxu0 0.0
    %83 = vmatpush.msra.mxu0 0.0
    %84 = vmatpush.msra.mxu0 0.0
    %85 = vmatpush.msra.mxu0 0.0
    %86 = vmatpush.msra.mxu0 0.0
    %87 = vmatpush.msra.mxu0 0.0
    %88 = vmatpush.msra.mxu0 0.0
    %89 = vmatpush.msra.mxu0 0.0
    %90 = vmatpush.msra.mxu0 0.0
    %91 = vmatpush.msra.mxu0 %v36
    %92 = vmatpush.msra.mxu0 %v32
    %93 = vmatpush.msra.mxu0 %v28
    %94 = vmatpush.msra.mxu0 %v24
    %95 = vmatmul.f32.gmra.mxu0 %v51
    %v96 = vpop.f32.mrf.mxu0
    %v97 = vadd.f32 %v42, %v96
    %98 = vmatmul.f32.gmra.mxu0 %v54
    %v99 = vpop.f32.mrf.mxu0
    %v100 = vadd.f32 %v42, %v99
    %101 = vdwg.mxu0
    %102 = vmatpush.msra.mxu0 0.0
    %103 = vmatpush.msra.mxu0 0.0
    %104 = vmatpush.msra.mxu0 0.0
    %105 = vmatpush.msra.mxu0 0.0
    %106 = vmatpush.msra.mxu0 0.0
    %107 = vmatpush.msra.mxu0 0.0
    %108 = vmatpush.msra.mxu0 0.0
    %109 = vmatpush.msra.mxu0 0.0
    %110 = vmatpush.msra.mxu0 0.0
    %111 = vmatpush.msra.mxu0 0.0
    %112 = vmatpush.msra.mxu0 0.0
    %113 = vmatpush.msra.mxu0 0.0
    %114 = vmatpush.msra.mxu0 %v37
    %115 = vmatpush.msra.mxu0 %v33
    %116 = vmatpush.msra.mxu0 %v29
    %117 = vmatpush.msra.mxu0 %v25
    %118 = vmatmul.f32.gmra.mxu0 %v51
    %v119 = vpop.f32.mrf.mxu0
    %v120 = vadd.f32 %v43, %v119
    %121 = vmatmul.f32.gmra.mxu0 %v54
    %v122 = vpop.f32.mrf.mxu0
    %v123 = vadd.f32 %v43, %v122
    %124 = vdwg.mxu0
    %125 = vmatpush.msra.mxu0 0.0
    %126 = vmatpush.msra.mxu0 0.0
    %127 = vmatpush.msra.mxu0 0.0
    %128 = vmatpush.msra.mxu0 0.0
    %129 = vmatpush.msra.mxu0 0.0
    %130 = vmatpush.msra.mxu0 0.0
    %131 = vmatpush.msra.mxu0 0.0
    %132 = vmatpush.msra.mxu0 0.0
    %133 = vmatpush.msra.mxu0 0.0
    %134 = vmatpush.msra.mxu0 0.0
    %135 = vmatpush.msra.mxu0 0.0
    %136 = vmatpush.msra.mxu0 0.0
    %137 = vmatpush.msra.mxu0 %v38
    %138 = vmatpush.msra.mxu0 %v34
    %139 = vmatpush.msra.mxu0 %v30
    %140 = vmatpush.msra.mxu0 %v26
    %141 = vmatmul.f32.gmra.mxu0 %v51
    %v142 = vpop.f32.mrf.mxu0
    %v143 = vadd.f32 %v44, %v142
    %144 = vmatmul.f32.gmra.mxu0 %v54
    %v145 = vpop.f32.mrf.mxu0
    %v146 = vadd.f32 %v44, %v145
    %147 = vdwg.mxu0
    %v148 = vmax.f32 %v74, 0.0
    %v149 = vmax.f32 %v97, 0.0
    %v150 = vmax.f32 %v120, 0.0
    %v151 = vmax.f32 %v143, 0.0
    %v152 = vmax.f32 %v77, 0.0
    %v153 = vmax.f32 %v100, 0.0
    %v154 = vmax.f32 %v123, 0.0
    %v155 = vmax.f32 %v146, 0.0
    %v156 = vld [vmem:[%s3] sm:$0xff]
    %v157 = vld [vmem:[%s3 + $0x8] sm:$0xff]
    %v158 = vld [vmem:[%s3 + $0x10] sm:$0xff]
    %v159 = vld [vmem:[%s3 + $0x18] sm:$0xff]
    %v160 = vld [vmem:[%s3 + $0x20] sm:$0xff]
    %v161 = vld [vmem:[%s3 + $0x28] sm:$0xff]
    %v162 = vld [vmem:[%s3 + $0x30] sm:$0xff]
    %v163 = vld [vmem:[%s3 + $0x38] sm:$0xff]
    %v164 = vld [vmem:[%s3 + $0x40] sm:$0xff]
    %v165 = vld [vmem:[%s3 + $0x48] sm:$0xff]
    %v166 = vld [vmem:[%s3 + $0x50] sm:$0xff]
    %v167 = vld [vmem:[%s3 + $0x58] sm:$0xff]
    %v168 = vld [vmem:[%s3 + $0x60] sm:$0xff]
    %v169 = vld [vmem:[%s3 + $0x68] sm:$0xff]
    %v170 = vld [vmem:[%s3 + $0x70] sm:$0xff]
    %v171 = vld [vmem:[%s3 + $0x78] sm:$0xff]
    %v172 = vld [vmem:[%s3 + $0x80] sm:$0xff]
    %v173 = vld [vmem:[%s3 + $0x88] sm:$0xff]
    %v174 = vld [vmem:[%s3 + $0x90] sm:$0xff]
    %v175 = vld [vmem:[%s3 + $0x98] sm:$0xff]
    %v176 = vld [vmem:[%s3 + $0xa0] sm:$0xff]
    %v177 = vld [vmem:[%s3 + $0xa8] sm:$0xff]
    %v178 = vld [vmem:[%s3 + $0xb0] sm:$0xff]
    %v179 = vld [vmem:[%s3 + $0xb8] sm:$0xff]
    %v180 = vld [vmem:[%s3 + $0xc0] sm:$0xff]
    %v181 = vld [vmem:[%s3 + $0xc8] sm:$0xff]
    %v182 = vld [vmem:[%s3 + $0xd0] sm:$0xff]
    %v183 = vld [vmem:[%s3 + $0xd8] sm:$0xff]
    %v184 = vld [vmem:[%s3 + $0xe0] sm:$0xff]
    %v185 = vld [vmem:[%s3 + $0xe8] sm:$0xff]
    %v186 = vld [vmem:[%s3 + $0xf0] sm:$0xff]
    %v187 = vld [vmem:[%s3 + $0xf8] sm:$0xff]
    %v188 = vld [vmem:[%s3 + $0x100] sm:$0xff]
    %v189 = vld [vmem:[%s3 + $0x108] sm:$0xff]
    %v190 = vld [vmem:[%s3 + $0x110] sm:$0xff]
    %v191 = vld [vmem:[%s3 + $0x118] sm:$0xff]
    %v192 = vld [vmem:[%s3 + $0x120] sm:$0xff]
    %v193 = vld [vmem:[%s3 + $0x128] sm:$0xff]
    %v194 = vld [vmem:[%s3 + $0x130] sm:$0xff]
    %v195 = vld [vmem:[%s3 + $0x138] sm:$0xff]
    %v196 = vld [vmem:[%s3 + $0x140] sm:$0xff]
    %v197 = vld [vmem:[%s3 + $0x148] sm:$0xff]
    %v198 = vld [vmem:[%s3 + $0x150] sm:$0xff]
    %v199 = vld [vmem:[%s3 + $0x158] sm:$0xff]
    %v200 = vld [vmem:[%s3 + $0x160] sm:$0xff]
    %v201 = vld [vmem:[%s3 + $0x168] sm:$0xff]
    %v202 = vld [vmem:[%s3 + $0x170] sm:$0xff]
    %v203 = vld [vmem:[%s3 + $0x178] sm:$0xff]
    %v204 = vld [vmem:[%s3 + $0x180] sm:$0xff]
    %v205 = vld [vmem:[%s3 + $0x188] sm:$0xff]
    %v206 = vld [vmem:[%s3 + $0x190] sm:$0xff]
    %v207 = vld [vmem:[%s3 + $0x198] sm:$0xff]
    %v208 = vld [vmem:[%s3 + $0x1a0] sm:$0xff]
    %v209 = vld [vmem:[%s3 + $0x1a8] sm:$0xff]
    %v210 = vld [vmem:[%s3 + $0x1b0] sm:$0xff]
    %v211 = vld [vmem:[%s3 + $0x1b8] sm:$0xff]
    %v212 = vld [vmem:[%s3 + $0x1c0] sm:$0xff]
    %v213 = vld [vmem:[%s3 + $0x1c8] sm:$0xff]
    %v214 = vld [vmem:[%s3 + $0x1d0] sm:$0xff]
    %v215 = vld [vmem:[%s3 + $0x1d8] sm:$0xff]
    %v216 = vld [vmem:[%s3 + $0x1e0] sm:$0xff]
    %v217 = vld [vmem:[%s3 + $0x1e8] sm:$0xff]
    %v218 = vld [vmem:[%s3 + $0x1f0] sm:$0xff]
    %v219 = vld [vmem:[%s3 + $0x1f8] sm:$0xff]
    %v220 = vld [vmem:[%s4] sm:$0x1]
    %v222 = vperm.slane %v220, 0
    %224 = vmatpush.msra.mxu0 %v171
    %225 = vmatpush.msra.mxu0 %v170
    %226 = vmatpush.msra.mxu0 %v169
    %227 = vmatpush.msra.mxu0 %v168
    %228 = vmatpush.msra.mxu0 %v167
    %229 = vmatpush.msra.mxu0 %v166
    %230 = vmatpush.msra.mxu0 %v165
    %231 = vmatpush.msra.mxu0 %v164
    %232 = vmatpush.msra.mxu0 %v163
    %233 = vmatpush.msra.mxu0 %v162
    %234 = vmatpush.msra.mxu0 %v161
    %235 = vmatpush.msra.mxu0 %v160
    %236 = vmatpush.msra.mxu0 %v159
    %237 = vmatpush.msra.mxu0 %v158
    %238 = vmatpush.msra.mxu0 %v157
    %239 = vmatpush.msra.mxu0 %v156
    %240 = vmatmul.f32.gmra.mxu0 %v148
    %v241 = vpop.f32.mrf.mxu0
    %v242 = vadd.f32 %v222, %v241
    %243 = vmatmul.f32.gmra.mxu0 %v152
    %v244 = vpop.f32.mrf.mxu0
    %v245 = vadd.f32 %v222, %v244
    %246 = vdwg.mxu0
    %247 = vmatpush.msra.mxu0 %v187
    %248 = vmatpush.msra.mxu0 %v186
    %249 = vmatpush.msra.mxu0 %v185
    %250 = vmatpush.msra.mxu0 %v184
    %251 = vmatpush.msra.mxu0 %v183
    %252 = vmatpush.msra.mxu0 %v182
    %253 = vmatpush.msra.mxu0 %v181
    %254 = vmatpush.msra.mxu0 %v180
    %255 = vmatpush.msra.mxu0 %v179
    %256 = vmatpush.msra.mxu0 %v178
    %257 = vmatpush.msra.mxu0 %v177
    %258 = vmatpush.msra.mxu0 %v176
    %259 = vmatpush.msra.mxu0 %v175
    %260 = vmatpush.msra.mxu0 %v174
    %261 = vmatpush.msra.mxu0 %v173
    %262 = vmatpush.msra.mxu0 %v172
    %263 = vmatmul.f32.gmra.mxu0 %v149
    %v264 = vpop.f32.mrf.mxu0
    %v265 = vadd.f32 %v242, %v264
    %266 = vmatmul.f32.gmra.mxu0 %v153
    %v267 = vpop.f32.mrf.mxu0
    %v268 = vadd.f32 %v245, %v267
    %269 = vdwg.mxu0
    %270 = vmatpush.msra.mxu0 %v203
    %271 = vmatpush.msra.mxu0 %v202
    %272 = vmatpush.msra.mxu0 %v201
    %273 = vmatpush.msra.mxu0 %v200
    %274 = vmatpush.msra.mxu0 %v199
    %275 = vmatpush.msra.mxu0 %v198
    %276 = vmatpush.msra.mxu0 %v197
    %277 = vmatpush.msra.mxu0 %v196
    %278 = vmatpush.msra.mxu0 %v195
    %279 = vmatpush.msra.mxu0 %v194
    %280 = vmatpush.msra.mxu0 %v193
    %281 = vmatpush.msra.mxu0 %v192
    %282 = vmatpush.msra.mxu0 %v191
    %283 = vmatpush.msra.mxu0 %v190
    %284 = vmatpush.msra.mxu0 %v189
    %285 = vmatpush.msra.mxu0 %v188
    %286 = vmatmul.f32.gmra.mxu0 %v150
    %v287 = vpop.f32.mrf.mxu0
    %v288 = vadd.f32 %v265, %v287
    %289 = vmatmul.f32.gmra.mxu0 %v154
    %v290 = vpop.f32.mrf.mxu0
    %v291 = vadd.f32 %v268, %v290
    %292 = vdwg.mxu0
    %293 = vmatpush.msra.mxu0 %v219
    %294 = vmatpush.msra.mxu0 %v218
    %295 = vmatpush.msra.mxu0 %v217
    %296 = vmatpush.msra.mxu0 %v216
    %297 = vmatpush.msra.mxu0 %v215
    %298 = vmatpush.msra.mxu0 %v214
    %299 = vmatpush.msra.mxu0 %v213
    %300 = vmatpush.msra.mxu0 %v212
    %301 = vmatpush.msra.mxu0 %v211
    %302 = vmatpush.msra.mxu0 %v210
    %303 = vmatpush.msra.mxu0 %v209
    %304 = vmatpush.msra.mxu0 %v208
    %305 = vmatpush.msra.mxu0 %v207
    %306 = vmatpush.msra.mxu0 %v206
    %307 = vmatpush.msra.mxu0 %v205
    %308 = vmatpush.msra.mxu0 %v204
    %309 = vmatmul.f32.gmra.mxu0 %v151
    %v310 = vpop.f32.mrf.mxu0
    %v311 = vadd.f32 %v288, %v310
    %312 = vmatmul.f32.gmra.mxu0 %v155
    %v313 = vpop.f32.mrf.mxu0
    %v314 = vadd.f32 %v291, %v313
    %315 = vdwg.mxu0
    %v316 = vmax.f32 %v311, 0.0
    %v317 = vmax.f32 %v314, 0.0
    %vm318 = vcmask 130048
    %319 = vst.msk [vmem:[#allocation2] sm:$0xff] %vm318, %v316
    %320 = vst.msk [vmem:[#allocation2 + $0x8] sm:$0xff] %vm318, %v317
    // Predicated region
    $region22: #{tpu_custom_call.1} parent=1 // pred_check
      _
    $region23: #{tpu_custom_call.1} parent=1 // pred_check_branch
      %322 = sbr.rel (0) target = $region25
    $region24: #{tpu_custom_call.1} parent=1 // pred_region
      %324 = vsyncadd [#allocation3], 0
      %s325 = sshll.u32 [#allocation2], 4
      %s326 = int_to_ptr.vmem [resolvable:$true] %s325
      %s327 = sshll.u32 %s5, 4
      %s328 = int_to_ptr.hbm [resolvable:$true] %s327
      %333 = dma.vmem_to_hbm [thread:$0]  %s326, 256, %s328, [#allocation3], 128, 128, 8
    $region25: #{tpu_custom_call.1} parent=1 // pred_fallthru
      _
    // Predicated region
    $region26: #{tpu_custom_call.1} parent=1 // pred_check
      _
    $region27: #{tpu_custom_call.1} parent=1 // pred_check_branch
      %335 = sbr.rel (0) target = $region29
    $region28: #{tpu_custom_call.1} parent=1 // pred_region
      %337 = dma.done [#allocation3], 256
    $region29: #{tpu_custom_call.1} parent=1 // pred_fallthru
      _
    %338 = vsyncpa [#allocation3], 1

</llo_original>
